<compile_context>
chip_gen: v7x
topology: tpu7x:2x2x1
jax: 0.10.0
libtpu: 0.0.40
codegen_flags: <defaults>
</compile_context>

<pallas_src>
import functools

import jax
import jax.numpy as jnp
import numpy as np
from jax.experimental import pallas as pl
from jax.experimental.pallas import tpu as pltpu

BETA = 0.25  # default commitment cost of the standard VectorQuantizer


def _pvq_kernel(z_ref, cb_ref, e_sq_ref, zq_ref, idx_ref, dmin_ref,
                *, num_q, n_e, d):
    # z_ref:    (tB, E)       input tile, E = num_q * d
    # cb_ref:   (Q, n_e, d)   dense codebook, VMEM-resident across B tiles
    # e_sq_ref: (Q, n_e)      ||e||^2 per code (host-precomputed from params)
    # zq_ref:   (tB, E)       quantized output tile (final layout)
    # idx_ref:  (tB, Q)       int32 code indices (final layout)
    # dmin_ref: (tB, Q)       ||z_chunk - e_sel||^2 (loss is reduced outside)
    tile_b = idx_ref.shape[0]
    e_sq = e_sq_ref[...]                                       # (Q, n_e)

    qpos = jax.lax.broadcasted_iota(jnp.int32, (tile_b, num_q), 1)
    idx_acc = jnp.zeros((tile_b, num_q), jnp.int32)
    dmin_acc = jnp.zeros((tile_b, num_q), jnp.float32)

    # Static Python loop over the (small) number of sub-quantizers.
    for q in range(num_q):
        zc = z_ref[:, q * d:(q + 1) * d]                       # (tB, d) static lane slice
        cb_q = cb_ref[q]                                       # (n_e, d)

        # Cross terms: z_chunk @ cb_q^T  (trans-B matmul, K=d, N=n_e — no zero MACs).
        cross = jax.lax.dot_general(
            zc, cb_q, (((1,), (1,)), ((), ())),
            preferred_element_type=jnp.float32)                # (tB, n_e)
        # ||z_chunk||^2 is constant per row -> drop it from the argmin score.
        score = e_sq[q:q + 1, :] - 2.0 * cross                 # (tB, n_e)

        # First-index argmin over width n_e only (masked-min tie-break).
        min_s = jnp.min(score, axis=1, keepdims=True)          # (tB, 1)
        col = jax.lax.broadcasted_iota(jnp.int32, score.shape, 1)
        amin = jnp.min(jnp.where(score <= min_s, col, jnp.int32(n_e)),
                       axis=1, keepdims=True)                  # (tB, 1)
        # TODO(synk): an all-NaN distance row selects nothing (zq chunk = 0,
        # idx = n_e) while jnp.argmin would return 0; not reachable for finite inputs.

        # Codebook lookup: one-hot @ cb_q (no gather).
        onehot = (col == amin).astype(jnp.float32)             # (tB, n_e)
        zq_chunk = jax.lax.dot_general(
            onehot, cb_q, (((1,), (0,)), ((), ())),
            preferred_element_type=jnp.float32)                # (tB, d)
        zq_ref[:, q * d:(q + 1) * d] = zq_chunk.astype(zq_ref.dtype)

        # min distance = min_score + ||z_chunk||^2  (exact identity; loss input).
        z_sq = jnp.sum(zc * zc, axis=1, keepdims=True)         # (tB, 1)
        sel = qpos == q
        idx_acc = jnp.where(sel, amin, idx_acc)
        dmin_acc = jnp.where(sel, min_s + z_sq, dmin_acc)

    idx_ref[...] = idx_acc                                     # one batched store
    dmin_ref[...] = dmin_acc


def _pick_tile_b(batch):
    # Large B tiles fill the MXU M dimension and amortize per-step overhead.
    # 256 is a good default on v6e/v7x, 128 on v5e; must be a multiple of 8.
    for t in (256, 128, 64, 32, 16, 8):
        if batch % t == 0:
            return t
    return batch


def product_vector_quantize(z, codebooks, *, tile_b=None):
    """z: (B, e_dim) f32, codebooks: (Q, n_e, d) f32 with e_dim == Q*d."""
    B, e_dim = z.shape
    Q, n_e, d = codebooks.shape
    assert e_dim == Q * d

    if tile_b is None:
        tile_b = _pick_tile_b(B)
    assert B % tile_b == 0
    grid = (B // tile_b,)

    # ||e||^2 is a pure function of the module parameters — precompute on host.
    e_sq = jnp.sum(codebooks.astype(jnp.float32) ** 2, axis=-1)   # (Q, n_e)

    kernel = functools.partial(_pvq_kernel, num_q=Q, n_e=n_e, d=d)

    # TODO(synk): at production sizes, raise vmem_limit_bytes (v6e has 128 MiB
    # physical; keep ~<48 MiB on v7x), sweep tile_b upward, and single-buffer
    # the constant codebook spec (pl.Buffered(1)) if VMEM gets tight.
    zq, idx, min_dist = pl.pallas_call(
        kernel,
        grid=grid,
        in_specs=[
            pl.BlockSpec((tile_b, e_dim), lambda i: (i, 0)),     # z tile (pipelined)
            pl.BlockSpec((Q, n_e, d), lambda i: (0, 0, 0)),      # codebook (resident)
            pl.BlockSpec((Q, n_e), lambda i: (0, 0)),            # ||e||^2 (resident)
        ],
        out_specs=(
            pl.BlockSpec((tile_b, e_dim), lambda i: (i, 0)),     # zq (final layout)
            pl.BlockSpec((tile_b, Q), lambda i: (i, 0)),         # indices
            pl.BlockSpec((tile_b, Q), lambda i: (i, 0)),         # min distances
        ),
        out_shape=(
            jax.ShapeDtypeStruct((B, e_dim), z.dtype),           # torch.cat(z_q, dim=1)
            jax.ShapeDtypeStruct((B, Q), jnp.int32),             # torch.stack(idx, dim=1)
            jax.ShapeDtypeStruct((B, Q), jnp.float32),           # per-(sample,q) min dist
        ),
        compiler_params=pltpu.CompilerParams(
            dimension_semantics=("parallel",),                   # B axis: megacore/v7x TCs
            vmem_limit_bytes=32 * 1024 * 1024,
        ),
    )(z, codebooks, e_sq)

    # Forward value of beta*mse(sg(zq), z) + mse(zq, sg(z)) == (1+beta)*mse;
    # equal chunk sizes -> mean over quantizers == mean over all min distances / d.
    # TODO(synk): straight-through / stop_gradient only affect backward; not
    # representable in a forward-only kernel.
    loss = (1.0 + BETA) * jnp.mean(min_dist) / d
    return zq, loss, idx


def _reference(z, codebooks):
    B, e_dim = z.shape
    Q, n_e, d = codebooks.shape
    zc = z.reshape(B, Q, d)
    dist = (jnp.sum(zc ** 2, -1, keepdims=True)
            + jnp.sum(codebooks ** 2, -1)[None, :, :]
            - 2.0 * jnp.einsum('bqd,qnd->bqn', zc, codebooks))
    idx = jnp.argmin(dist, axis=-1)                               # (B, Q)
    zq = codebooks[jnp.arange(Q)[None, :], idx]                   # (B, Q, d)
    per_q_loss = (1.0 + BETA) * jnp.mean((zq - zc) ** 2, axis=(0, 2))
    return zq.reshape(B, e_dim), jnp.mean(per_q_loss), idx


if __name__ == "__main__":
    # Small, module-consistent shapes.
    n_e = 64          # codebook size per sub-quantizer
    e_dim = 64        # total embedding dim
    num_quantizers = 4
    d = e_dim // num_quantizers
    B = 8

    key = jax.random.PRNGKey(0)
    k_z, k_cb = jax.random.split(key)
    z = jax.random.normal(k_z, (B, e_dim), dtype=jnp.float32)
    # nn.Embedding init of VectorQuantizer: uniform(-1/n_e, 1/n_e), deterministic.
    codebooks = jax.random.uniform(
        k_cb, (num_quantizers, n_e, d), dtype=jnp.float32,
        minval=-1.0 / n_e, maxval=1.0 / n_e)

    zq, loss, indices = product_vector_quantize(z, codebooks)
    jax.block_until_ready((zq, loss, indices))

    zq_ref, loss_ref, idx_ref = _reference(z, codebooks)
    np.testing.assert_allclose(np.asarray(zq), np.asarray(zq_ref), rtol=1e-5, atol=1e-5)
    np.testing.assert_allclose(np.asarray(loss), np.asarray(loss_ref), rtol=1e-5, atol=1e-6)
    np.testing.assert_array_equal(np.asarray(indices), np.asarray(idx_ref))

    print("KERNEL_OK")
</pallas_src>

<mosaic_0001>
module attributes {stable_mosaic.version = 11 : i64} {
  func.func @_pvq_kernel(%arg0: i32, %arg1: memref<8x64xf32, #tpu.memory_space<vmem>>, %arg2: memref<4x64x16xf32, #tpu.memory_space<vmem>>, %arg3: memref<4x64xf32, #tpu.memory_space<vmem>>, %arg4: memref<8x64xf32, #tpu.memory_space<vmem>>, %arg5: memref<8x4xi32, #tpu.memory_space<vmem>>, %arg6: memref<8x4xf32, #tpu.memory_space<vmem>>) attributes {dimension_semantics = [#tpu.dimension_semantics<parallel>], iteration_bounds = array<i64: 1>, scalar_prefetch = 0 : i64, scratch_operands = 0 : i64, tpu.core_type = #tpu.core_type<tc>, window_params = [{transform_indices = @transform_0, window_bounds = array<i64: 8, 64>}, {pipeline_mode = #tpu.pipeline_mode<synchronous>, transform_indices = @transform_1, window_bounds = array<i64: 4, 64, 16>}, {pipeline_mode = #tpu.pipeline_mode<synchronous>, transform_indices = @transform_2, window_bounds = array<i64: 4, 64>}, {transform_indices = @transform_3, window_bounds = array<i64: 8, 64>}, {transform_indices = @transform_4, window_bounds = array<i64: 8, 4>}, {transform_indices = @transform_5, window_bounds = array<i64: 8, 4>}]} {
    %c0 = arith.constant 0 : index
    %c0_0 = arith.constant 0 : index
    %0 = vector.load %arg3[%c0, %c0_0] : memref<4x64xf32, #tpu.memory_space<vmem>>, vector<4x64xf32>
    %1 = tpu.iota {dimensions = array<i32: 1>} : vector<8x4xi32>
    %c0_i32 = arith.constant 0 : i32
    %2 = vector.broadcast %c0_i32 : i32 to vector<8x4xi32>
    %cst = arith.constant 0.000000e+00 : f32
    %3 = vector.broadcast %cst : f32 to vector<8x4xf32>
    %c0_1 = arith.constant 0 : index
    %c0_2 = arith.constant 0 : index
    %4 = vector.load %arg1[%c0_1, %c0_2] : memref<8x64xf32, #tpu.memory_space<vmem>>, vector<8x16xf32>
    %c0_3 = arith.constant 0 : index
    %c0_4 = arith.constant 0 : index
    %c0_5 = arith.constant 0 : index
    %5 = vector.load %arg2[%c0_3, %c0_4, %c0_5] : memref<4x64x16xf32, #tpu.memory_space<vmem>>, vector<1x64x16xf32>
    %6 = vector.shape_cast %5 : vector<1x64x16xf32> to vector<64x16xf32>
    %cst_6 = arith.constant dense<0.000000e+00> : vector<8x64xf32>
    %7 = tpu.matmul %4, %6, %cst_6 {dimension_numbers = #tpu.dot_dimension_numbers<[1], [1], [0], [0], [0, 0, 1, 0], [], []>} : vector<8x16xf32>, vector<64x16xf32>, vector<8x64xf32> -> vector<8x64xf32>
    %8 = vector.extract_strided_slice %0 {offsets = [0, 0], sizes = [1, 64], strides = [1, 1]} : vector<4x64xf32> to vector<1x64xf32>
    %cst_7 = arith.constant 2.000000e+00 : f32
    %9 = vector.broadcast %cst_7 : f32 to vector<8x64xf32>
    %10 = arith.mulf %9, %7 : vector<8x64xf32>
    %11 = vector.broadcast %8 : vector<1x64xf32> to vector<8x64xf32>
    %12 = arith.subf %11, %10 : vector<8x64xf32>
    %cst_8 = arith.constant dense<0x7F800000> : vector<8xf32>
    %13 = vector.multi_reduction <minimumf>, %12, %cst_8 [1] : vector<8x64xf32> to vector<8xf32>
    %14 = vector.shape_cast %13 : vector<8xf32> to vector<8x1xf32>
    %15 = tpu.iota {dimensions = array<i32: 1>} : vector<8x64xi32>
    %16 = vector.broadcast %14 : vector<8x1xf32> to vector<8x64xf32>
    %17 = arith.cmpf ole, %12, %16 : vector<8x64xf32>
    %c64_i32 = arith.constant 64 : i32
    %18 = vector.broadcast %c64_i32 : i32 to vector<8x64xi32>
    %19 = arith.select %17, %15, %18 : vector<8x64xi1>, vector<8x64xi32>
    %cst_9 = arith.constant dense<2147483647> : vector<8xi32>
    %20 = vector.multi_reduction <minsi>, %19, %cst_9 [1] : vector<8x64xi32> to vector<8xi32>
    %21 = vector.shape_cast %20 : vector<8xi32> to vector<8x1xi32>
    %22 = vector.broadcast %21 : vector<8x1xi32> to vector<8x64xi32>
    %23 = arith.cmpi eq, %15, %22 : vector<8x64xi32>
    %24 = arith.extui %23 : vector<8x64xi1> to vector<8x64xi32>
    %25 = arith.sitofp %24 : vector<8x64xi32> to vector<8x64xf32>
    %cst_10 = arith.constant dense<0.000000e+00> : vector<8x16xf32>
    %26 = tpu.matmul %25, %6, %cst_10 {dimension_numbers = #tpu.dot_dimension_numbers<[1], [0], [0], [1], [0, 0, 1, 1], [], []>} : vector<8x64xf32>, vector<64x16xf32>, vector<8x16xf32> -> vector<8x16xf32>
    %c0_11 = arith.constant 0 : index
    %c0_12 = arith.constant 0 : index
    %27 = vector.load %arg4[%c0_11, %c0_12] : memref<8x64xf32, #tpu.memory_space<vmem>>, vector<8x16xf32>
    tpu.vector_store %arg4[%c0_11, %c0_12], %26 {strides = array<i32>} : memref<8x64xf32, #tpu.memory_space<vmem>>, vector<8x16xf32>,
    %28 = arith.mulf %4, %4 : vector<8x16xf32>
    %cst_13 = arith.constant dense<0.000000e+00> : vector<8xf32>
    %29 = vector.multi_reduction <add>, %28, %cst_13 [1] : vector<8x16xf32> to vector<8xf32>
    %30 = vector.shape_cast %29 : vector<8xf32> to vector<8x1xf32>
    %c0_i32_14 = arith.constant 0 : i32
    %31 = vector.broadcast %c0_i32_14 : i32 to vector<8x4xi32>
    %32 = arith.cmpi eq, %1, %31 : vector<8x4xi32>
    %33 = vector.shape_cast %21 : vector<8x1xi32> to vector<8x1xi32>
    %34 = vector.broadcast %33 : vector<8x1xi32> to vector<8x4xi32>
    %35 = arith.select %32, %34, %2 : vector<8x4xi1>, vector<8x4xi32>
    %36 = arith.addf %14, %30 : vector<8x1xf32>
    %37 = vector.shape_cast %36 : vector<8x1xf32> to vector<8x1xf32>
    %38 = vector.broadcast %37 : vector<8x1xf32> to vector<8x4xf32>
    %39 = arith.select %32, %38, %3 : vector<8x4xi1>, vector<8x4xf32>
    %c0_15 = arith.constant 0 : index
    %c16 = arith.constant 16 : index
    %40 = vector.load %arg1[%c0_15, %c16] : memref<8x64xf32, #tpu.memory_space<vmem>>, vector<8x16xf32>
    %c1 = arith.constant 1 : index
    %c0_16 = arith.constant 0 : index
    %c0_17 = arith.constant 0 : index
    %41 = vector.load %arg2[%c1, %c0_16, %c0_17] : memref<4x64x16xf32, #tpu.memory_space<vmem>>, vector<1x64x16xf32>
    %42 = vector.shape_cast %41 : vector<1x64x16xf32> to vector<64x16xf32>
    %cst_18 = arith.constant dense<0.000000e+00> : vector<8x64xf32>
    %43 = tpu.matmul %40, %42, %cst_18 {dimension_numbers = #tpu.dot_dimension_numbers<[1], [1], [0], [0], [0, 0, 1, 0], [], []>} : vector<8x16xf32>, vector<64x16xf32>, vector<8x64xf32> -> vector<8x64xf32>
    %44 = vector.extract_strided_slice %0 {offsets = [1, 0], sizes = [1, 64], strides = [1, 1]} : vector<4x64xf32> to vector<1x64xf32>
    %cst_19 = arith.constant 2.000000e+00 : f32
    %45 = vector.broadcast %cst_19 : f32 to vector<8x64xf32>
    %46 = arith.mulf %45, %43 : vector<8x64xf32>
    %47 = vector.broadcast %44 : vector<1x64xf32> to vector<8x64xf32>
    %48 = arith.subf %47, %46 : vector<8x64xf32>
    %cst_20 = arith.constant dense<0x7F800000> : vector<8xf32>
    %49 = vector.multi_reduction <minimumf>, %48, %cst_20 [1] : vector<8x64xf32> to vector<8xf32>
    %50 = vector.shape_cast %49 : vector<8xf32> to vector<8x1xf32>
    %51 = tpu.iota {dimensions = array<i32: 1>} : vector<8x64xi32>
    %52 = vector.broadcast %50 : vector<8x1xf32> to vector<8x64xf32>
    %53 = arith.cmpf ole, %48, %52 : vector<8x64xf32>
    %c64_i32_21 = arith.constant 64 : i32
    %54 = vector.broadcast %c64_i32_21 : i32 to vector<8x64xi32>
    %55 = arith.select %53, %51, %54 : vector<8x64xi1>, vector<8x64xi32>
    %cst_22 = arith.constant dense<2147483647> : vector<8xi32>
    %56 = vector.multi_reduction <minsi>, %55, %cst_22 [1] : vector<8x64xi32> to vector<8xi32>
    %57 = vector.shape_cast %56 : vector<8xi32> to vector<8x1xi32>
    %58 = vector.broadcast %57 : vector<8x1xi32> to vector<8x64xi32>
    %59 = arith.cmpi eq, %51, %58 : vector<8x64xi32>
    %60 = arith.extui %59 : vector<8x64xi1> to vector<8x64xi32>
    %61 = arith.sitofp %60 : vector<8x64xi32> to vector<8x64xf32>
    %cst_23 = arith.constant dense<0.000000e+00> : vector<8x16xf32>
    %62 = tpu.matmul %61, %42, %cst_23 {dimension_numbers = #tpu.dot_dimension_numbers<[1], [0], [0], [1], [0, 0, 1, 1], [], []>} : vector<8x64xf32>, vector<64x16xf32>, vector<8x16xf32> -> vector<8x16xf32>
    %c0_24 = arith.constant 0 : index
    %c16_25 = arith.constant 16 : index
    %63 = vector.load %arg4[%c0_24, %c16_25] : memref<8x64xf32, #tpu.memory_space<vmem>>, vector<8x16xf32>
    tpu.vector_store %arg4[%c0_24, %c16_25], %62 {strides = array<i32>} : memref<8x64xf32, #tpu.memory_space<vmem>>, vector<8x16xf32>,
    %64 = arith.mulf %40, %40 : vector<8x16xf32>
    %cst_26 = arith.constant dense<0.000000e+00> : vector<8xf32>
    %65 = vector.multi_reduction <add>, %64, %cst_26 [1] : vector<8x16xf32> to vector<8xf32>
    %66 = vector.shape_cast %65 : vector<8xf32> to vector<8x1xf32>
    %c1_i32 = arith.constant 1 : i32
    %67 = vector.broadcast %c1_i32 : i32 to vector<8x4xi32>
    %68 = arith.cmpi eq, %1, %67 : vector<8x4xi32>
    %69 = vector.shape_cast %57 : vector<8x1xi32> to vector<8x1xi32>
    %70 = vector.broadcast %69 : vector<8x1xi32> to vector<8x4xi32>
    %71 = arith.select %68, %70, %35 : vector<8x4xi1>, vector<8x4xi32>
    %72 = arith.addf %50, %66 : vector<8x1xf32>
    %73 = vector.shape_cast %72 : vector<8x1xf32> to vector<8x1xf32>
    %74 = vector.broadcast %73 : vector<8x1xf32> to vector<8x4xf32>
    %75 = arith.select %68, %74, %39 : vector<8x4xi1>, vector<8x4xf32>
    %c0_27 = arith.constant 0 : index
    %c32 = arith.constant 32 : index
    %76 = vector.load %arg1[%c0_27, %c32] : memref<8x64xf32, #tpu.memory_space<vmem>>, vector<8x16xf32>
    %c2 = arith.constant 2 : index
    %c0_28 = arith.constant 0 : index
    %c0_29 = arith.constant 0 : index
    %77 = vector.load %arg2[%c2, %c0_28, %c0_29] : memref<4x64x16xf32, #tpu.memory_space<vmem>>, vector<1x64x16xf32>
    %78 = vector.shape_cast %77 : vector<1x64x16xf32> to vector<64x16xf32>
    %cst_30 = arith.constant dense<0.000000e+00> : vector<8x64xf32>
    %79 = tpu.matmul %76, %78, %cst_30 {dimension_numbers = #tpu.dot_dimension_numbers<[1], [1], [0], [0], [0, 0, 1, 0], [], []>} : vector<8x16xf32>, vector<64x16xf32>, vector<8x64xf32> -> vector<8x64xf32>
    %80 = vector.extract_strided_slice %0 {offsets = [2, 0], sizes = [1, 64], strides = [1, 1]} : vector<4x64xf32> to vector<1x64xf32>
    %cst_31 = arith.constant 2.000000e+00 : f32
    %81 = vector.broadcast %cst_31 : f32 to vector<8x64xf32>
    %82 = arith.mulf %81, %79 : vector<8x64xf32>
    %83 = vector.broadcast %80 : vector<1x64xf32> to vector<8x64xf32>
    %84 = arith.subf %83, %82 : vector<8x64xf32>
    %cst_32 = arith.constant dense<0x7F800000> : vector<8xf32>
    %85 = vector.multi_reduction <minimumf>, %84, %cst_32 [1] : vector<8x64xf32> to vector<8xf32>
    %86 = vector.shape_cast %85 : vector<8xf32> to vector<8x1xf32>
    %87 = tpu.iota {dimensions = array<i32: 1>} : vector<8x64xi32>
    %88 = vector.broadcast %86 : vector<8x1xf32> to vector<8x64xf32>
    %89 = arith.cmpf ole, %84, %88 : vector<8x64xf32>
    %c64_i32_33 = arith.constant 64 : i32
    %90 = vector.broadcast %c64_i32_33 : i32 to vector<8x64xi32>
    %91 = arith.select %89, %87, %90 : vector<8x64xi1>, vector<8x64xi32>
    %cst_34 = arith.constant dense<2147483647> : vector<8xi32>
    %92 = vector.multi_reduction <minsi>, %91, %cst_34 [1] : vector<8x64xi32> to vector<8xi32>
    %93 = vector.shape_cast %92 : vector<8xi32> to vector<8x1xi32>
    %94 = vector.broadcast %93 : vector<8x1xi32> to vector<8x64xi32>
    %95 = arith.cmpi eq, %87, %94 : vector<8x64xi32>
    %96 = arith.extui %95 : vector<8x64xi1> to vector<8x64xi32>
    %97 = arith.sitofp %96 : vector<8x64xi32> to vector<8x64xf32>
    %cst_35 = arith.constant dense<0.000000e+00> : vector<8x16xf32>
    %98 = tpu.matmul %97, %78, %cst_35 {dimension_numbers = #tpu.dot_dimension_numbers<[1], [0], [0], [1], [0, 0, 1, 1], [], []>} : vector<8x64xf32>, vector<64x16xf32>, vector<8x16xf32> -> vector<8x16xf32>
    %c0_36 = arith.constant 0 : index
    %c32_37 = arith.constant 32 : index
    %99 = vector.load %arg4[%c0_36, %c32_37] : memref<8x64xf32, #tpu.memory_space<vmem>>, vector<8x16xf32>
    tpu.vector_store %arg4[%c0_36, %c32_37], %98 {strides = array<i32>} : memref<8x64xf32, #tpu.memory_space<vmem>>, vector<8x16xf32>,
    %100 = arith.mulf %76, %76 : vector<8x16xf32>
    %cst_38 = arith.constant dense<0.000000e+00> : vector<8xf32>
    %101 = vector.multi_reduction <add>, %100, %cst_38 [1] : vector<8x16xf32> to vector<8xf32>
    %102 = vector.shape_cast %101 : vector<8xf32> to vector<8x1xf32>
    %c2_i32 = arith.constant 2 : i32
    %103 = vector.broadcast %c2_i32 : i32 to vector<8x4xi32>
    %104 = arith.cmpi eq, %1, %103 : vector<8x4xi32>
    %105 = vector.shape_cast %93 : vector<8x1xi32> to vector<8x1xi32>
    %106 = vector.broadcast %105 : vector<8x1xi32> to vector<8x4xi32>
    %107 = arith.select %104, %106, %71 : vector<8x4xi1>, vector<8x4xi32>
    %108 = arith.addf %86, %102 : vector<8x1xf32>
    %109 = vector.shape_cast %108 : vector<8x1xf32> to vector<8x1xf32>
    %110 = vector.broadcast %109 : vector<8x1xf32> to vector<8x4xf32>
    %111 = arith.select %104, %110, %75 : vector<8x4xi1>, vector<8x4xf32>
    %c0_39 = arith.constant 0 : index
    %c48 = arith.constant 48 : index
    %112 = vector.load %arg1[%c0_39, %c48] : memref<8x64xf32, #tpu.memory_space<vmem>>, vector<8x16xf32>
    %c3 = arith.constant 3 : index
    %c0_40 = arith.constant 0 : index
    %c0_41 = arith.constant 0 : index
    %113 = vector.load %arg2[%c3, %c0_40, %c0_41] : memref<4x64x16xf32, #tpu.memory_space<vmem>>, vector<1x64x16xf32>
    %114 = vector.shape_cast %113 : vector<1x64x16xf32> to vector<64x16xf32>
    %cst_42 = arith.constant dense<0.000000e+00> : vector<8x64xf32>
    %115 = tpu.matmul %112, %114, %cst_42 {dimension_numbers = #tpu.dot_dimension_numbers<[1], [1], [0], [0], [0, 0, 1, 0], [], []>} : vector<8x16xf32>, vector<64x16xf32>, vector<8x64xf32> -> vector<8x64xf32>
    %116 = vector.extract_strided_slice %0 {offsets = [3, 0], sizes = [1, 64], strides = [1, 1]} : vector<4x64xf32> to vector<1x64xf32>
    %cst_43 = arith.constant 2.000000e+00 : f32
    %117 = vector.broadcast %cst_43 : f32 to vector<8x64xf32>
    %118 = arith.mulf %117, %115 : vector<8x64xf32>
    %119 = vector.broadcast %116 : vector<1x64xf32> to vector<8x64xf32>
    %120 = arith.subf %119, %118 : vector<8x64xf32>
    %cst_44 = arith.constant dense<0x7F800000> : vector<8xf32>
    %121 = vector.multi_reduction <minimumf>, %120, %cst_44 [1] : vector<8x64xf32> to vector<8xf32>
    %122 = vector.shape_cast %121 : vector<8xf32> to vector<8x1xf32>
    %123 = tpu.iota {dimensions = array<i32: 1>} : vector<8x64xi32>
    %124 = vector.broadcast %122 : vector<8x1xf32> to vector<8x64xf32>
    %125 = arith.cmpf ole, %120, %124 : vector<8x64xf32>
    %c64_i32_45 = arith.constant 64 : i32
    %126 = vector.broadcast %c64_i32_45 : i32 to vector<8x64xi32>
    %127 = arith.select %125, %123, %126 : vector<8x64xi1>, vector<8x64xi32>
    %cst_46 = arith.constant dense<2147483647> : vector<8xi32>
    %128 = vector.multi_reduction <minsi>, %127, %cst_46 [1] : vector<8x64xi32> to vector<8xi32>
    %129 = vector.shape_cast %128 : vector<8xi32> to vector<8x1xi32>
    %130 = vector.broadcast %129 : vector<8x1xi32> to vector<8x64xi32>
    %131 = arith.cmpi eq, %123, %130 : vector<8x64xi32>
    %132 = arith.extui %131 : vector<8x64xi1> to vector<8x64xi32>
    %133 = arith.sitofp %132 : vector<8x64xi32> to vector<8x64xf32>
    %cst_47 = arith.constant dense<0.000000e+00> : vector<8x16xf32>
    %134 = tpu.matmul %133, %114, %cst_47 {dimension_numbers = #tpu.dot_dimension_numbers<[1], [0], [0], [1], [0, 0, 1, 1], [], []>} : vector<8x64xf32>, vector<64x16xf32>, vector<8x16xf32> -> vector<8x16xf32>
    %c0_48 = arith.constant 0 : index
    %c48_49 = arith.constant 48 : index
    %135 = vector.load %arg4[%c0_48, %c48_49] : memref<8x64xf32, #tpu.memory_space<vmem>>, vector<8x16xf32>
    tpu.vector_store %arg4[%c0_48, %c48_49], %134 {strides = array<i32>} : memref<8x64xf32, #tpu.memory_space<vmem>>, vector<8x16xf32>,
    %136 = arith.mulf %112, %112 : vector<8x16xf32>
    %cst_50 = arith.constant dense<0.000000e+00> : vector<8xf32>
    %137 = vector.multi_reduction <add>, %136, %cst_50 [1] : vector<8x16xf32> to vector<8xf32>
    %138 = vector.shape_cast %137 : vector<8xf32> to vector<8x1xf32>
    %c3_i32 = arith.constant 3 : i32
    %139 = vector.broadcast %c3_i32 : i32 to vector<8x4xi32>
    %140 = arith.cmpi eq, %1, %139 : vector<8x4xi32>
    %141 = vector.shape_cast %129 : vector<8x1xi32> to vector<8x1xi32>
    %142 = vector.broadcast %141 : vector<8x1xi32> to vector<8x4xi32>
    %143 = arith.select %140, %142, %107 : vector<8x4xi1>, vector<8x4xi32>
    %144 = arith.addf %122, %138 : vector<8x1xf32>
    %145 = vector.shape_cast %144 : vector<8x1xf32> to vector<8x1xf32>
    %146 = vector.broadcast %145 : vector<8x1xf32> to vector<8x4xf32>
    %147 = arith.select %140, %146, %111 : vector<8x4xi1>, vector<8x4xf32>
    %c0_51 = arith.constant 0 : index
    %c0_52 = arith.constant 0 : index
    %148 = vector.load %arg5[%c0_51, %c0_52] : memref<8x4xi32, #tpu.memory_space<vmem>>, vector<8x4xi32>
    tpu.vector_store %arg5[%c0_51, %c0_52], %143 {strides = array<i32>} : memref<8x4xi32, #tpu.memory_space<vmem>>, vector<8x4xi32>,
    %c0_53 = arith.constant 0 : index
    %c0_54 = arith.constant 0 : index
    %149 = vector.load %arg6[%c0_53, %c0_54] : memref<8x4xf32, #tpu.memory_space<vmem>>, vector<8x4xf32>
    tpu.vector_store %arg6[%c0_53, %c0_54], %147 {strides = array<i32>} : memref<8x4xf32, #tpu.memory_space<vmem>>, vector<8x4xf32>,
    return
  }
  func.func @transform_0(%arg0: i32) -> (i32, i32) {
    %c0_i32 = arith.constant 0 : i32
    %c0_i32_0 = arith.constant 0 : i32
    return %arg0, %c0_i32 : i32, i32
  }
  func.func @transform_1(%arg0: i32) -> (i32, i32, i32) {
    %c0_i32 = arith.constant 0 : i32
    %c0_i32_0 = arith.constant 0 : i32
    %c0_i32_1 = arith.constant 0 : i32
    %c0_i32_2 = arith.constant 0 : i32
    return %c0_i32, %c0_i32_0, %c0_i32_1 : i32, i32, i32
  }
  func.func @transform_2(%arg0: i32) -> (i32, i32) {
    %c0_i32 = arith.constant 0 : i32
    %c0_i32_0 = arith.constant 0 : i32
    %c0_i32_1 = arith.constant 0 : i32
    return %c0_i32, %c0_i32_0 : i32, i32
  }
  func.func @transform_3(%arg0: i32) -> (i32, i32) {
    %c0_i32 = arith.constant 0 : i32
    %c0_i32_0 = arith.constant 0 : i32
    return %arg0, %c0_i32 : i32, i32
  }
  func.func @transform_4(%arg0: i32) -> (i32, i32) {
    %c0_i32 = arith.constant 0 : i32
    %c0_i32_0 = arith.constant 0 : i32
    return %arg0, %c0_i32 : i32, i32
  }
  func.func @transform_5(%arg0: i32) -> (i32, i32) {
    %c0_i32 = arith.constant 0 : i32
    %c0_i32_0 = arith.constant 0 : i32
    return %arg0, %c0_i32 : i32, i32
  }
}

</mosaic_0001>

<llo_original>
// kernel: tpu_custom_call.1
$region0: #{tpu_custom_call.1}
  #allocation0 [shape = 'u32[]', space=smem, size = 0x4, offset = 0x4, fixed_abs, tag = 'smem constant byte address 0x4 - core index']
  #allocation1 [shape = 'u32[144,128]{1,0:T(1,128)}', space=vmem, size = 0x12000, scoped, tag = 'internal scratch']
  %s0 = inlined_call_operand.vmem [shape: f32[8,64], index: 0, kind: input, shape index: {}]
  %s1 = inlined_call_operand.vmem [shape: f32[4,64,16], index: 1, kind: input, shape index: {}]
  %s2 = inlined_call_operand.vmem [shape: f32[4,64], index: 2, kind: input, shape index: {}]
  %s3 = inlined_call_operand.hbm [shape: f32[8,64], index: 3, kind: output, shape index: {0}]
  %s4 = inlined_call_operand.vmem [shape: s32[8,4], index: 4, kind: output, shape index: {1}]
  %s5 = inlined_call_operand.vmem [shape: f32[8,4], index: 5, kind: output, shape index: {2}]
  %6 = xla_tuple %s3, %s4, %s5
  %s7 = sld [smem:[#allocation0]]
  $region38: #{tpu_custom_call.1} parent=0
    _
  %s9 = ssub.s32 1, %s7
  %s10 = scalar_select 0, %s9, %s7
  $region1: #{tpu_custom_call.1} parent=0
    #allocation2 [shape = 'u8[4096]{0}', space=vmem, size = 0x1000, scoped, tag = 'output window, operand 0, single buffered']
    #allocation3 [shape = 's32[1]{0}', space=sflag, size = 0x4, scoped, tag = 'scoped memory for tpu_custom_call.1']
    %11 = vsyncpa [#allocation3], 0
    // Predicated region
    $region2: #{tpu_custom_call.1} parent=1 // pred_check
      _
    $region3: #{tpu_custom_call.1} parent=1 // pred_check_branch
      %13 = sbr.rel (0) target = $region5
    $region4: #{tpu_custom_call.1} parent=1 // pred_region
      _
    $region5: #{tpu_custom_call.1} parent=1 // pred_fallthru
      _
    // Predicated region
    $region6: #{tpu_custom_call.1} parent=1 // pred_check
      _
    $region7: #{tpu_custom_call.1} parent=1 // pred_check_branch
      %15 = sbr.rel (0) target = $region9
    $region8: #{tpu_custom_call.1} parent=1 // pred_region
      _
    $region9: #{tpu_custom_call.1} parent=1 // pred_fallthru
      _
    // Predicated region
    $region10: #{tpu_custom_call.1} parent=1 // pred_check
      _
    $region11: #{tpu_custom_call.1} parent=1 // pred_check_branch
      %17 = sbr.rel (0) target = $region13
    $region12: #{tpu_custom_call.1} parent=1 // pred_region
      _
    $region13: #{tpu_custom_call.1} parent=1 // pred_fallthru
      _
    %v18 = vld [vmem:[%s2] sm:$0xf]
    %v19 = vlaneseq
    %v20 = vand.u32 %v19, 127
    %v21 = vld [vmem:[%s0] sm:$0xff]
    %v22 = vld [vmem:[%s1] sm:$0xff]
    %v23 = vld [vmem:[%s1 + $0x8] sm:$0xff]
    %v24 = vld [vmem:[%s1 + $0x10] sm:$0xff]
    %v25 = vld [vmem:[%s1 + $0x18] sm:$0xff]
    %v26 = vld [vmem:[%s1 + $0x20] sm:$0xff]
    %v27 = vld [vmem:[%s1 + $0x28] sm:$0xff]
    %v28 = vld [vmem:[%s1 + $0x30] sm:$0xff]
    %v29 = vld [vmem:[%s1 + $0x38] sm:$0xff]
    %vm30 = vcmask 130048
    %v32 = vsel %vm30, %v21, 0
    %v35 = vsel %vm30, %v22, 0
    %v38 = vsel %vm30, %v23, 0
    %v41 = vsel %vm30, %v24, 0
    %v44 = vsel %vm30, %v25, 0
    %v47 = vsel %vm30, %v26, 0
    %v50 = vsel %vm30, %v27, 0
    %v53 = vsel %vm30, %v28, 0
    %v56 = vsel %vm30, %v29, 0
    %58 = vmatprep.subr.mxu0 0.0
    %59 = vmatpush1.xpose.msra.mxu0 %v35
    %60 = vmatprep.subr.mxu0 0.0
    %61 = vmatpush1.xpose.msra.mxu0 %v38
    %62 = vmatprep.subr.mxu0 0.0
    %63 = vmatpush1.xpose.msra.mxu0 %v41
    %64 = vmatprep.subr.mxu0 0.0
    %65 = vmatpush1.xpose.msra.mxu0 %v44
    %66 = vmatprep.subr.mxu0 0.0
    %67 = vmatpush1.xpose.msra.mxu0 %v47
    %68 = vmatprep.subr.mxu0 0.0
    %69 = vmatpush1.xpose.msra.mxu0 %v50
    %70 = vmatprep.subr.mxu0 0.0
    %71 = vmatpush1.xpose.msra.mxu0 %v53
    %72 = vmatprep.subr.mxu0 0.0
    %73 = vmatpush1.xpose.msra.mxu0 %v56
    %74 = vmatprep.subr.mxu0 0.0
    %75 = vmatpush1.xpose.msra.mxu0 0.0
    %76 = vmatprep.subr.mxu0 0.0
    %77 = vmatpush1.xpose.msra.mxu0 0.0
    %78 = vmatprep.subr.mxu0 0.0
    %79 = vmatpush1.xpose.msra.mxu0 0.0
    %80 = vmatprep.subr.mxu0 0.0
    %81 = vmatpush1.xpose.msra.mxu0 0.0
    %82 = vmatprep.subr.mxu0 0.0
    %83 = vmatpush1.xpose.msra.mxu0 0.0
    %84 = vmatprep.subr.mxu0 0.0
    %85 = vmatpush1.xpose.msra.mxu0 0.0
    %86 = vmatprep.subr.mxu0 0.0
    %87 = vmatpush1.xpose.msra.mxu0 0.0
    %88 = vmatprep.subr.mxu0 0.0
    %89 = vmatpush1.xpose.msra.mxu0 0.0
    %90 = vmatprep.subr.mxu0 0.0
    %91 = vmatpush1.xpose.msra.mxu0 0.0
    %92 = vmatprep.subr.mxu0 0.0
    %93 = vmatpush1.xpose.msra.mxu0 0.0
    %94 = vmatprep.subr.mxu0 0.0
    %95 = vmatpush1.xpose.msra.mxu0 0.0
    %96 = vmatprep.subr.mxu0 0.0
    %97 = vmatpush1.xpose.msra.mxu0 0.0
    %98 = vmatprep.subr.mxu0 0.0
    %99 = vmatpush1.xpose.msra.mxu0 0.0
    %100 = vmatprep.subr.mxu0 0.0
    %101 = vmatpush1.xpose.msra.mxu0 0.0
    %102 = vmatprep.subr.mxu0 0.0
    %103 = vmatpush1.xpose.msra.mxu0 0.0
    %104 = vmatprep.subr.mxu0 0.0
    %105 = vmatpush1.xpose.msra.mxu0 0.0
    %106 = vmatprep.subr.mxu0 0.0
    %107 = vmatpush1.xpose.msra.mxu0 0.0
    %108 = vmatprep.subr.mxu0 0.0
    %109 = vmatpush1.xpose.msra.mxu0 0.0
    %110 = vmatprep.subr.mxu0 0.0
    %111 = vmatpush1.xpose.msra.mxu0 0.0
    %112 = vmatprep.subr.mxu0 0.0
    %113 = vmatpush1.xpose.msra.mxu0 0.0
    %114 = vmatprep.subr.mxu0 0.0
    %115 = vmatpush1.xpose.msra.mxu0 0.0
    %116 = vmatprep.subr.mxu0 0.0
    %117 = vmatpush1.xpose.msra.mxu0 0.0
    %118 = vmatprep.subr.mxu0 0.0
    %119 = vmatpush1.xpose.msra.mxu0 0.0
    %120 = vmatprep.subr.mxu0 0.0
    %121 = vmatpush1.xpose.msra.mxu0 0.0
    %122 = vmatprep.mubr.f32.mxu0 0.0
    %123 = vmatmul.mubr.f32.gmra.mrb[0].mxu0 %v32
    %v124 = vpop.f32.mrb[0].mxu0
    %v125 = vadd.f32 0.0, %v124
    %v126 = vpop.f32.mrb[0].mxu0
    %127 = vdwg.mxu0
    %v128 = vmul.f32 %v125, 2.0
    %v129 = vlaneseq
    %v130 = vshrl.u32 %v129, 7
    %v131 = vsub.s32 0, %v130
    %v132 = vrot.slane %v18, %v131
    %v133 = vsub.f32 %v132, %v128
    %vm134 = vcmask 523264
    %v135 = vsel %vm134, %v133, inf
    %136 = vmin.xlane.f32.xlu0 %v135
    %v137 = vpop.xlane.xlu0 %136
    %vm138 = vcmp.le.f32.partialorder %v133, %v137
    %v139 = vsel %vm138, %v20, 64
    %v140 = vsel %vm134, %v139, 2147483647
    %v141 = vand.u32 %v140, 65535
    %v142 = vshra.s32 %v140, 16
    %v143 = vcvt.s32.f32 %v141
    %v144 = vcvt.s32.f32 %v142
    %145 = vmin.xlane.f32.xlu0 %v144
    %v146 = vpop.xlane.xlu0 %145
    %vm147 = vcmp.eq.f32.partialorder %v144, %v146
    %v148 = vsel %vm147, %v143, inf
    %149 = vmin.xlane.f32.xlu0 %v148
    %v150 = vpop.xlane.xlu0 %149
    %v151 = vcvt.f32.s32 %v150
    %v152 = vcvt.f32.s32 %v146
    %v153 = vshll.u32 %v152, 16
    %v154 = vadd.s32 %v153, %v151
    %vm155 = vcmp.eq.s32.totalorder %v20, %v154
    %v156 = vsel %vm155, 1, 0
    %v157 = vcvt.s32.f32 %v156
    %v159 = vsel %vm134, %v157, 0
    %161 = vmatprep.subr.mxu0 0.0
    %162 = vmatpush1.msra.mxu0 %v22
    %163 = vmatprep.subr.mxu0 0.0
    %164 = vmatpush1.msra.mxu0 %v23
    %165 = vmatprep.subr.mxu0 0.0
    %166 = vmatpush1.msra.mxu0 %v24
    %167 = vmatprep.subr.mxu0 0.0
    %168 = vmatpush1.msra.mxu0 %v25
    %169 = vmatprep.subr.mxu0 0.0
    %170 = vmatpush1.msra.mxu0 %v26
    %171 = vmatprep.subr.mxu0 0.0
    %172 = vmatpush1.msra.mxu0 %v27
    %173 = vmatprep.subr.mxu0 0.0
    %174 = vmatpush1.msra.mxu0 %v28
    %175 = vmatprep.subr.mxu0 0.0
    %176 = vmatpush1.msra.mxu0 %v29
    %177 = vmatprep.subr.mxu0 0.0
    %178 = vmatpush1.msra.mxu0 0.0
    %179 = vmatprep.subr.mxu0 0.0
    %180 = vmatpush1.msra.mxu0 0.0
    %181 = vmatprep.subr.mxu0 0.0
    %182 = vmatpush1.msra.mxu0 0.0
    %183 = vmatprep.subr.mxu0 0.0
    %184 = vmatpush1.msra.mxu0 0.0
    %185 = vmatprep.subr.mxu0 0.0
    %186 = vmatpush1.msra.mxu0 0.0
    %187 = vmatprep.subr.mxu0 0.0
    %188 = vmatpush1.msra.mxu0 0.0
    %189 = vmatprep.subr.mxu0 0.0
    %190 = vmatpush1.msra.mxu0 0.0
    %191 = vmatprep.subr.mxu0 0.0
    %192 = vmatpush1.msra.mxu0 0.0
    %193 = vmatprep.subr.mxu0 0.0
    %194 = vmatpush1.msra.mxu0 0.0
    %195 = vmatprep.subr.mxu0 0.0
    %196 = vmatpush1.msra.mxu0 0.0
    %197 = vmatprep.subr.mxu0 0.0
    %198 = vmatpush1.msra.mxu0 0.0
    %199 = vmatprep.subr.mxu0 0.0
    %200 = vmatpush1.msra.mxu0 0.0
    %201 = vmatprep.subr.mxu0 0.0
    %202 = vmatpush1.msra.mxu0 0.0
    %203 = vmatprep.subr.mxu0 0.0
    %204 = vmatpush1.msra.mxu0 0.0
    %205 = vmatprep.subr.mxu0 0.0
    %206 = vmatpush1.msra.mxu0 0.0
    %207 = vmatprep.subr.mxu0 0.0
    %208 = vmatpush1.msra.mxu0 0.0
    %209 = vmatprep.subr.mxu0 0.0
    %210 = vmatpush1.msra.mxu0 0.0
    %211 = vmatprep.subr.mxu0 0.0
    %212 = vmatpush1.msra.mxu0 0.0
    %213 = vmatprep.subr.mxu0 0.0
    %214 = vmatpush1.msra.mxu0 0.0
    %215 = vmatprep.subr.mxu0 0.0
    %216 = vmatpush1.msra.mxu0 0.0
    %217 = vmatprep.subr.mxu0 0.0
    %218 = vmatpush1.msra.mxu0 0.0
    %219 = vmatprep.subr.mxu0 0.0
    %220 = vmatpush1.msra.mxu0 0.0
    %221 = vmatprep.subr.mxu0 0.0
    %222 = vmatpush1.msra.mxu0 0.0
    %223 = vmatprep.subr.mxu0 0.0
    %224 = vmatpush1.msra.mxu0 0.0
    %225 = vmatprep.mubr.f32.mxu0 0.0
    %226 = vmatmul.mubr.f32.gmra.mrb[0].mxu0 %v159
    %v227 = vpop.f32.mrb[0].mxu0
    %v228 = vadd.f32 0.0, %v227
    %v229 = vpop.f32.mrb[0].mxu0
    %230 = vdwg.mxu0
    %231 = vst.msk [vmem:[#allocation2] sm:$0xff] %vm30, %v228
    %v232 = vmul.f32 %v21, %v21
    %v233 = vsel %vm30, %v232, 0.0
    %234 = vadd.xlane.f32.xlu0 %v233
    %v235 = vpop.xlane.xlu0 %234
    %vm236 = vcmp.eq.s32.totalorder %v20, 0
    %v237 = vsel %vm236, %v154, 0
    %v238 = vadd.f32 %v137, %v235
    %v239 = vsel %vm236, %v238, 0.0
    %v240 = vld [vmem:[%s0] sm:$0xff]
    %s241 = scalar_lea.vmem %s1, 64
    %v242 = vld [vmem:[%s241] sm:$0xff]
    %v243 = vld [vmem:[%s241 + $0x8] sm:$0xff]
    %v244 = vld [vmem:[%s241 + $0x10] sm:$0xff]
    %v245 = vld [vmem:[%s241 + $0x18] sm:$0xff]
    %v246 = vld [vmem:[%s241 + $0x20] sm:$0xff]
    %v247 = vld [vmem:[%s241 + $0x28] sm:$0xff]
    %v248 = vld [vmem:[%s241 + $0x30] sm:$0xff]
    %v249 = vld [vmem:[%s241 + $0x38] sm:$0xff]
    %251 = vrot.lane.b32.xlu0 %v240, 112
    %v252 = vpop.permute.xlu0 %251
    %v253 = vsel %vm30, %v252, 0
    %v256 = vsel %vm30, %v242, 0
    %v259 = vsel %vm30, %v243, 0
    %v262 = vsel %vm30, %v244, 0
    %v265 = vsel %vm30, %v245, 0
    %v268 = vsel %vm30, %v246, 0
    %v271 = vsel %vm30, %v247, 0
    %v274 = vsel %vm30, %v248, 0
    %v277 = vsel %vm30, %v249, 0
    %279 = vmatprep.subr.mxu0 0.0
    %280 = vmatpush1.xpose.msra.mxu0 %v256
    %281 = vmatprep.subr.mxu0 0.0
    %282 = vmatpush1.xpose.msra.mxu0 %v259
    %283 = vmatprep.subr.mxu0 0.0
    %284 = vmatpush1.xpose.msra.mxu0 %v262
    %285 = vmatprep.subr.mxu0 0.0
    %286 = vmatpush1.xpose.msra.mxu0 %v265
    %287 = vmatprep.subr.mxu0 0.0
    %288 = vmatpush1.xpose.msra.mxu0 %v268
    %289 = vmatprep.subr.mxu0 0.0
    %290 = vmatpush1.xpose.msra.mxu0 %v271
    %291 = vmatprep.subr.mxu0 0.0
    %292 = vmatpush1.xpose.msra.mxu0 %v274
    %293 = vmatprep.subr.mxu0 0.0
    %294 = vmatpush1.xpose.msra.mxu0 %v277
    %295 = vmatprep.subr.mxu0 0.0
    %296 = vmatpush1.xpose.msra.mxu0 0.0
    %297 = vmatprep.subr.mxu0 0.0
    %298 = vmatpush1.xpose.msra.mxu0 0.0
    %299 = vmatprep.subr.mxu0 0.0
    %300 = vmatpush1.xpose.msra.mxu0 0.0
    %301 = vmatprep.subr.mxu0 0.0
    %302 = vmatpush1.xpose.msra.mxu0 0.0
    %303 = vmatprep.subr.mxu0 0.0
    %304 = vmatpush1.xpose.msra.mxu0 0.0
    %305 = vmatprep.subr.mxu0 0.0
    %306 = vmatpush1.xpose.msra.mxu0 0.0
    %307 = vmatprep.subr.mxu0 0.0
    %308 = vmatpush1.xpose.msra.mxu0 0.0
    %309 = vmatprep.subr.mxu0 0.0
    %310 = vmatpush1.xpose.msra.mxu0 0.0
    %311 = vmatprep.subr.mxu0 0.0
    %312 = vmatpush1.xpose.msra.mxu0 0.0
    %313 = vmatprep.subr.mxu0 0.0
    %314 = vmatpush1.xpose.msra.mxu0 0.0
    %315 = vmatprep.subr.mxu0 0.0
    %316 = vmatpush1.xpose.msra.mxu0 0.0
    %317 = vmatprep.subr.mxu0 0.0
    %318 = vmatpush1.xpose.msra.mxu0 0.0
    %319 = vmatprep.subr.mxu0 0.0
    %320 = vmatpush1.xpose.msra.mxu0 0.0
    %321 = vmatprep.subr.mxu0 0.0
    %322 = vmatpush1.xpose.msra.mxu0 0.0
    %323 = vmatprep.subr.mxu0 0.0
    %324 = vmatpush1.xpose.msra.mxu0 0.0
    %325 = vmatprep.subr.mxu0 0.0
    %326 = vmatpush1.xpose.msra.mxu0 0.0
    %327 = vmatprep.subr.mxu0 0.0
    %328 = vmatpush1.xpose.msra.mxu0 0.0
    %329 = vmatprep.subr.mxu0 0.0
    %330 = vmatpush1.xpose.msra.mxu0 0.0
    %331 = vmatprep.subr.mxu0 0.0
    %332 = vmatpush1.xpose.msra.mxu0 0.0
    %333 = vmatprep.subr.mxu0 0.0
    %334 = vmatpush1.xpose.msra.mxu0 0.0
    %335 = vmatprep.subr.mxu0 0.0
    %336 = vmatpush1.xpose.msra.mxu0 0.0
    %337 = vmatprep.subr.mxu0 0.0
    %338 = vmatpush1.xpose.msra.mxu0 0.0
    %339 = vmatprep.subr.mxu0 0.0
    %340 = vmatpush1.xpose.msra.mxu0 0.0
    %341 = vmatprep.subr.mxu0 0.0
    %342 = vmatpush1.xpose.msra.mxu0 0.0
    %343 = vmatprep.mubr.f32.mxu0 0.0
    %344 = vmatmul.mubr.f32.gmra.mrb[0].mxu0 %v253
    %v345 = vpop.f32.mrb[0].mxu0
    %v346 = vadd.f32 0.0, %v345
    %v347 = vpop.f32.mrb[0].mxu0
    %348 = vdwg.mxu0
    %v349 = vmul.f32 %v346, 2.0
    %v350 = vlaneseq
    %v351 = vshrl.u32 %v350, 7
    %v352 = vsub.s32 1, %v351
    %v353 = vrot.slane %v18, %v352
    %v354 = vsub.f32 %v353, %v349
    %v355 = vsel %vm134, %v354, inf
    %356 = vmin.xlane.f32.xlu0 %v355
    %v357 = vpop.xlane.xlu0 %356
    %vm358 = vcmp.le.f32.partialorder %v354, %v357
    %v359 = vsel %vm358, %v20, 64
    %v360 = vsel %vm134, %v359, 2147483647
    %v361 = vand.u32 %v360, 65535
    %v362 = vshra.s32 %v360, 16
    %v363 = vcvt.s32.f32 %v361
    %v364 = vcvt.s32.f32 %v362
    %365 = vmin.xlane.f32.xlu0 %v364
    %v366 = vpop.xlane.xlu0 %365
    %vm367 = vcmp.eq.f32.partialorder %v364, %v366
    %v368 = vsel %vm367, %v363, inf
    %369 = vmin.xlane.f32.xlu0 %v368
    %v370 = vpop.xlane.xlu0 %369
    %v371 = vcvt.f32.s32 %v370
    %v372 = vcvt.f32.s32 %v366
    %v373 = vshll.u32 %v372, 16
    %v374 = vadd.s32 %v373, %v371
    %vm375 = vcmp.eq.s32.totalorder %v20, %v374
    %v376 = vsel %vm375, 1, 0
    %v377 = vcvt.s32.f32 %v376
    %v379 = vsel %vm134, %v377, 0
    %381 = vmatprep.subr.mxu0 0.0
    %382 = vmatpush1.msra.mxu0 %v242
    %383 = vmatprep.subr.mxu0 0.0
    %384 = vmatpush1.msra.mxu0 %v243
    %385 = vmatprep.subr.mxu0 0.0
    %386 = vmatpush1.msra.mxu0 %v244
    %387 = vmatprep.subr.mxu0 0.0
    %388 = vmatpush1.msra.mxu0 %v245
    %389 = vmatprep.subr.mxu0 0.0
    %390 = vmatpush1.msra.mxu0 %v246
    %391 = vmatprep.subr.mxu0 0.0
    %392 = vmatpush1.msra.mxu0 %v247
    %393 = vmatprep.subr.mxu0 0.0
    %394 = vmatpush1.msra.mxu0 %v248
    %395 = vmatprep.subr.mxu0 0.0
    %396 = vmatpush1.msra.mxu0 %v249
    %397 = vmatprep.subr.mxu0 0.0
    %398 = vmatpush1.msra.mxu0 0.0
    %399 = vmatprep.subr.mxu0 0.0
    %400 = vmatpush1.msra.mxu0 0.0
    %401 = vmatprep.subr.mxu0 0.0
    %402 = vmatpush1.msra.mxu0 0.0
    %403 = vmatprep.subr.mxu0 0.0
    %404 = vmatpush1.msra.mxu0 0.0
    %405 = vmatprep.subr.mxu0 0.0
    %406 = vmatpush1.msra.mxu0 0.0
    %407 = vmatprep.subr.mxu0 0.0
    %408 = vmatpush1.msra.mxu0 0.0
    %409 = vmatprep.subr.mxu0 0.0
    %410 = vmatpush1.msra.mxu0 0.0
    %411 = vmatprep.subr.mxu0 0.0
    %412 = vmatpush1.msra.mxu0 0.0
    %413 = vmatprep.subr.mxu0 0.0
    %414 = vmatpush1.msra.mxu0 0.0
    %415 = vmatprep.subr.mxu0 0.0
    %416 = vmatpush1.msra.mxu0 0.0
    %417 = vmatprep.subr.mxu0 0.0
    %418 = vmatpush1.msra.mxu0 0.0
    %419 = vmatprep.subr.mxu0 0.0
    %420 = vmatpush1.msra.mxu0 0.0
    %421 = vmatprep.subr.mxu0 0.0
    %422 = vmatpush1.msra.mxu0 0.0
    %423 = vmatprep.subr.mxu0 0.0
    %424 = vmatpush1.msra.mxu0 0.0
    %425 = vmatprep.subr.mxu0 0.0
    %426 = vmatpush1.msra.mxu0 0.0
    %427 = vmatprep.subr.mxu0 0.0
    %428 = vmatpush1.msra.mxu0 0.0
    %429 = vmatprep.subr.mxu0 0.0
    %430 = vmatpush1.msra.mxu0 0.0
    %431 = vmatprep.subr.mxu0 0.0
    %432 = vmatpush1.msra.mxu0 0.0
    %433 = vmatprep.subr.mxu0 0.0
    %434 = vmatpush1.msra.mxu0 0.0
    %435 = vmatprep.subr.mxu0 0.0
    %436 = vmatpush1.msra.mxu0 0.0
    %437 = vmatprep.subr.mxu0 0.0
    %438 = vmatpush1.msra.mxu0 0.0
    %439 = vmatprep.subr.mxu0 0.0
    %440 = vmatpush1.msra.mxu0 0.0
    %441 = vmatprep.subr.mxu0 0.0
    %442 = vmatpush1.msra.mxu0 0.0
    %443 = vmatprep.subr.mxu0 0.0
    %444 = vmatpush1.msra.mxu0 0.0
    %445 = vmatprep.mubr.f32.mxu0 0.0
    %446 = vmatmul.mubr.f32.gmra.mrb[0].mxu0 %v379
    %v447 = vpop.f32.mrb[0].mxu0
    %v448 = vadd.f32 0.0, %v447
    %v449 = vpop.f32.mrb[0].mxu0
    %450 = vdwg.mxu0
    %452 = vrot.lane.b32.xlu0 %v448, 16
    %v453 = vpop.permute.xlu0 %452
    %vm455 = vcmask 261248
    %456 = vst.msk [vmem:[#allocation2] sm:$0xff] %vm455, %v453
    %v457 = vmul.f32 %v240, %v240
    %459 = vrot.lane.b32.xlu0 %v457, 112
    %v460 = vpop.permute.xlu0 %459
    %v462 = vsel %vm30, %v460, 0.0
    %463 = vadd.xlane.f32.xlu0 %v462
    %v464 = vpop.xlane.xlu0 %463
    %vm465 = vcmp.eq.s32.totalorder %v20, 1
    %v466 = vsel %vm465, %v374, %v237
    %v467 = vadd.f32 %v357, %v464
    %v468 = vsel %vm465, %v467, %v239
    %v469 = vld [vmem:[%s0] sm:$0xff]
    %s470 = scalar_lea.vmem %s1, 128
    %v471 = vld [vmem:[%s470] sm:$0xff]
    %v472 = vld [vmem:[%s470 + $0x8] sm:$0xff]
    %v473 = vld [vmem:[%s470 + $0x10] sm:$0xff]
    %v474 = vld [vmem:[%s470 + $0x18] sm:$0xff]
    %v475 = vld [vmem:[%s470 + $0x20] sm:$0xff]
    %v476 = vld [vmem:[%s470 + $0x28] sm:$0xff]
    %v477 = vld [vmem:[%s470 + $0x30] sm:$0xff]
    %v478 = vld [vmem:[%s470 + $0x38] sm:$0xff]
    %480 = vrot.lane.b32.xlu0 %v469, 96
    %v481 = vpop.permute.xlu0 %480
    %v482 = vsel %vm30, %v481, 0
    %v485 = vsel %vm30, %v471, 0
    %v488 = vsel %vm30, %v472, 0
    %v491 = vsel %vm30, %v473, 0
    %v494 = vsel %vm30, %v474, 0
    %v497 = vsel %vm30, %v475, 0
    %v500 = vsel %vm30, %v476, 0
    %v503 = vsel %vm30, %v477, 0
    %v506 = vsel %vm30, %v478, 0
    %508 = vmatprep.subr.mxu0 0.0
    %509 = vmatpush1.xpose.msra.mxu0 %v485
    %510 = vmatprep.subr.mxu0 0.0
    %511 = vmatpush1.xpose.msra.mxu0 %v488
    %512 = vmatprep.subr.mxu0 0.0
    %513 = vmatpush1.xpose.msra.mxu0 %v491
    %514 = vmatprep.subr.mxu0 0.0
    %515 = vmatpush1.xpose.msra.mxu0 %v494
    %516 = vmatprep.subr.mxu0 0.0
    %517 = vmatpush1.xpose.msra.mxu0 %v497
    %518 = vmatprep.subr.mxu0 0.0
    %519 = vmatpush1.xpose.msra.mxu0 %v500
    %520 = vmatprep.subr.mxu0 0.0
    %521 = vmatpush1.xpose.msra.mxu0 %v503
    %522 = vmatprep.subr.mxu0 0.0
    %523 = vmatpush1.xpose.msra.mxu0 %v506
    %524 = vmatprep.subr.mxu0 0.0
    %525 = vmatpush1.xpose.msra.mxu0 0.0
    %526 = vmatprep.subr.mxu0 0.0
    %527 = vmatpush1.xpose.msra.mxu0 0.0
    %528 = vmatprep.subr.mxu0 0.0
    %529 = vmatpush1.xpose.msra.mxu0 0.0
    %530 = vmatprep.subr.mxu0 0.0
    %531 = vmatpush1.xpose.msra.mxu0 0.0
    %532 = vmatprep.subr.mxu0 0.0
    %533 = vmatpush1.xpose.msra.mxu0 0.0
    %534 = vmatprep.subr.mxu0 0.0
    %535 = vmatpush1.xpose.msra.mxu0 0.0
    %536 = vmatprep.subr.mxu0 0.0
    %537 = vmatpush1.xpose.msra.mxu0 0.0
    %538 = vmatprep.subr.mxu0 0.0
    %539 = vmatpush1.xpose.msra.mxu0 0.0
    %540 = vmatprep.subr.mxu0 0.0
    %541 = vmatpush1.xpose.msra.mxu0 0.0
    %542 = vmatprep.subr.mxu0 0.0
    %543 = vmatpush1.xpose.msra.mxu0 0.0
    %544 = vmatprep.subr.mxu0 0.0
    %545 = vmatpush1.xpose.msra.mxu0 0.0
    %546 = vmatprep.subr.mxu0 0.0
    %547 = vmatpush1.xpose.msra.mxu0 0.0
    %548 = vmatprep.subr.mxu0 0.0
    %549 = vmatpush1.xpose.msra.mxu0 0.0
    %550 = vmatprep.subr.mxu0 0.0
    %551 = vmatpush1.xpose.msra.mxu0 0.0
    %552 = vmatprep.subr.mxu0 0.0
    %553 = vmatpush1.xpose.msra.mxu0 0.0
    %554 = vmatprep.subr.mxu0 0.0
    %555 = vmatpush1.xpose.msra.mxu0 0.0
    %556 = vmatprep.subr.mxu0 0.0
    %557 = vmatpush1.xpose.msra.mxu0 0.0
    %558 = vmatprep.subr.mxu0 0.0
    %559 = vmatpush1.xpose.msra.mxu0 0.0
    %560 = vmatprep.subr.mxu0 0.0
    %561 = vmatpush1.xpose.msra.mxu0 0.0
    %562 = vmatprep.subr.mxu0 0.0
    %563 = vmatpush1.xpose.msra.mxu0 0.0
    %564 = vmatprep.subr.mxu0 0.0
    %565 = vmatpush1.xpose.msra.mxu0 0.0
    %566 = vmatprep.subr.mxu0 0.0
    %567 = vmatpush1.xpose.msra.mxu0 0.0
    %568 = vmatprep.subr.mxu0 0.0
    %569 = vmatpush1.xpose.msra.mxu0 0.0
    %570 = vmatprep.subr.mxu0 0.0
    %571 = vmatpush1.xpose.msra.mxu0 0.0
    %572 = vmatprep.mubr.f32.mxu0 0.0
    %573 = vmatmul.mubr.f32.gmra.mrb[0].mxu0 %v482
    %v574 = vpop.f32.mrb[0].mxu0
    %v575 = vadd.f32 0.0, %v574
    %v576 = vpop.f32.mrb[0].mxu0
    %577 = vdwg.mxu0
    %v578 = vmul.f32 %v575, 2.0
    %v579 = vlaneseq
    %v580 = vshrl.u32 %v579, 7
    %v581 = vsub.s32 2, %v580
    %v582 = vrot.slane %v18, %v581
    %v583 = vsub.f32 %v582, %v578
    %v584 = vsel %vm134, %v583, inf
    %585 = vmin.xlane.f32.xlu0 %v584
    %v586 = vpop.xlane.xlu0 %585
    %vm587 = vcmp.le.f32.partialorder %v583, %v586
    %v588 = vsel %vm587, %v20, 64
    %v589 = vsel %vm134, %v588, 2147483647
    %v590 = vand.u32 %v589, 65535
    %v591 = vshra.s32 %v589, 16
    %v592 = vcvt.s32.f32 %v590
    %v593 = vcvt.s32.f32 %v591
    %594 = vmin.xlane.f32.xlu0 %v593
    %v595 = vpop.xlane.xlu0 %594
    %vm596 = vcmp.eq.f32.partialorder %v593, %v595
    %v597 = vsel %vm596, %v592, inf
    %598 = vmin.xlane.f32.xlu0 %v597
    %v599 = vpop.xlane.xlu0 %598
    %v600 = vcvt.f32.s32 %v599
    %v601 = vcvt.f32.s32 %v595
    %v602 = vshll.u32 %v601, 16
    %v603 = vadd.s32 %v602, %v600
    %vm604 = vcmp.eq.s32.totalorder %v20, %v603
    %v605 = vsel %vm604, 1, 0
    %v606 = vcvt.s32.f32 %v605
    %v608 = vsel %vm134, %v606, 0
    %610 = vmatprep.subr.mxu0 0.0
    %611 = vmatpush1.msra.mxu0 %v471
    %612 = vmatprep.subr.mxu0 0.0
    %613 = vmatpush1.msra.mxu0 %v472
    %614 = vmatprep.subr.mxu0 0.0
    %615 = vmatpush1.msra.mxu0 %v473
    %616 = vmatprep.subr.mxu0 0.0
    %617 = vmatpush1.msra.mxu0 %v474
    %618 = vmatprep.subr.mxu0 0.0
    %619 = vmatpush1.msra.mxu0 %v475
    %620 = vmatprep.subr.mxu0 0.0
    %621 = vmatpush1.msra.mxu0 %v476
    %622 = vmatprep.subr.mxu0 0.0
    %623 = vmatpush1.msra.mxu0 %v477
    %624 = vmatprep.subr.mxu0 0.0
    %625 = vmatpush1.msra.mxu0 %v478
    %626 = vmatprep.subr.mxu0 0.0
    %627 = vmatpush1.msra.mxu0 0.0
    %628 = vmatprep.subr.mxu0 0.0
    %629 = vmatpush1.msra.mxu0 0.0
    %630 = vmatprep.subr.mxu0 0.0
    %631 = vmatpush1.msra.mxu0 0.0
    %632 = vmatprep.subr.mxu0 0.0
    %633 = vmatpush1.msra.mxu0 0.0
    %634 = vmatprep.subr.mxu0 0.0
    %635 = vmatpush1.msra.mxu0 0.0
    %636 = vmatprep.subr.mxu0 0.0
    %637 = vmatpush1.msra.mxu0 0.0
    %638 = vmatprep.subr.mxu0 0.0
    %639 = vmatpush1.msra.mxu0 0.0
    %640 = vmatprep.subr.mxu0 0.0
    %641 = vmatpush1.msra.mxu0 0.0
    %642 = vmatprep.subr.mxu0 0.0
    %643 = vmatpush1.msra.mxu0 0.0
    %644 = vmatprep.subr.mxu0 0.0
    %645 = vmatpush1.msra.mxu0 0.0
    %646 = vmatprep.subr.mxu0 0.0
    %647 = vmatpush1.msra.mxu0 0.0
    %648 = vmatprep.subr.mxu0 0.0
    %649 = vmatpush1.msra.mxu0 0.0
    %650 = vmatprep.subr.mxu0 0.0
    %651 = vmatpush1.msra.mxu0 0.0
    %652 = vmatprep.subr.mxu0 0.0
    %653 = vmatpush1.msra.mxu0 0.0
    %654 = vmatprep.subr.mxu0 0.0
    %655 = vmatpush1.msra.mxu0 0.0
    %656 = vmatprep.subr.mxu0 0.0
    %657 = vmatpush1.msra.mxu0 0.0
    %658 = vmatprep.subr.mxu0 0.0
    %659 = vmatpush1.msra.mxu0 0.0
    %660 = vmatprep.subr.mxu0 0.0
    %661 = vmatpush1.msra.mxu0 0.0
    %662 = vmatprep.subr.mxu0 0.0
    %663 = vmatpush1.msra.mxu0 0.0
    %664 = vmatprep.subr.mxu0 0.0
    %665 = vmatpush1.msra.mxu0 0.0
    %666 = vmatprep.subr.mxu0 0.0
    %667 = vmatpush1.msra.mxu0 0.0
    %668 = vmatprep.subr.mxu0 0.0
    %669 = vmatpush1.msra.mxu0 0.0
    %670 = vmatprep.subr.mxu0 0.0
    %671 = vmatpush1.msra.mxu0 0.0
    %672 = vmatprep.subr.mxu0 0.0
    %673 = vmatpush1.msra.mxu0 0.0
    %674 = vmatprep.mubr.f32.mxu0 0.0
    %675 = vmatmul.mubr.f32.gmra.mrb[0].mxu0 %v608
    %v676 = vpop.f32.mrb[0].mxu0
    %v677 = vadd.f32 0.0, %v676
    %v678 = vpop.f32.mrb[0].mxu0
    %679 = vdwg.mxu0
    %681 = vrot.lane.b32.xlu0 %v677, 32
    %v682 = vpop.permute.xlu0 %681
    %vm684 = vcmask 392448
    %685 = vst.msk [vmem:[#allocation2] sm:$0xff] %vm684, %v682
    %v686 = vmul.f32 %v469, %v469
    %688 = vrot.lane.b32.xlu0 %v686, 96
    %v689 = vpop.permute.xlu0 %688
    %v691 = vsel %vm30, %v689, 0.0
    %692 = vadd.xlane.f32.xlu0 %v691
    %v693 = vpop.xlane.xlu0 %692
    %vm694 = vcmp.eq.s32.totalorder %v20, 2
    %v695 = vsel %vm694, %v603, %v466
    %v696 = vadd.f32 %v586, %v693
    %v697 = vsel %vm694, %v696, %v468
    %v698 = vld [vmem:[%s0] sm:$0xff]
    %s699 = scalar_lea.vmem %s1, 192
    %v700 = vld [vmem:[%s699] sm:$0xff]
    %v701 = vld [vmem:[%s699 + $0x8] sm:$0xff]
    %v702 = vld [vmem:[%s699 + $0x10] sm:$0xff]
    %v703 = vld [vmem:[%s699 + $0x18] sm:$0xff]
    %v704 = vld [vmem:[%s699 + $0x20] sm:$0xff]
    %v705 = vld [vmem:[%s699 + $0x28] sm:$0xff]
    %v706 = vld [vmem:[%s699 + $0x30] sm:$0xff]
    %v707 = vld [vmem:[%s699 + $0x38] sm:$0xff]
    %709 = vrot.lane.b32.xlu0 %v698, 80
    %v710 = vpop.permute.xlu0 %709
    %v711 = vsel %vm30, %v710, 0
    %v714 = vsel %vm30, %v700, 0
    %v717 = vsel %vm30, %v701, 0
    %v720 = vsel %vm30, %v702, 0
    %v723 = vsel %vm30, %v703, 0
    %v726 = vsel %vm30, %v704, 0
    %v729 = vsel %vm30, %v705, 0
    %v732 = vsel %vm30, %v706, 0
    %v735 = vsel %vm30, %v707, 0
    %737 = vmatprep.subr.mxu0 0.0
    %738 = vmatpush1.xpose.msra.mxu0 %v714
    %739 = vmatprep.subr.mxu0 0.0
    %740 = vmatpush1.xpose.msra.mxu0 %v717
    %741 = vmatprep.subr.mxu0 0.0
    %742 = vmatpush1.xpose.msra.mxu0 %v720
    %743 = vmatprep.subr.mxu0 0.0
    %744 = vmatpush1.xpose.msra.mxu0 %v723
    %745 = vmatprep.subr.mxu0 0.0
    %746 = vmatpush1.xpose.msra.mxu0 %v726
    %747 = vmatprep.subr.mxu0 0.0
    %748 = vmatpush1.xpose.msra.mxu0 %v729
    %749 = vmatprep.subr.mxu0 0.0
    %750 = vmatpush1.xpose.msra.mxu0 %v732
    %751 = vmatprep.subr.mxu0 0.0
    %752 = vmatpush1.xpose.msra.mxu0 %v735
    %753 = vmatprep.subr.mxu0 0.0
    %754 = vmatpush1.xpose.msra.mxu0 0.0
    %755 = vmatprep.subr.mxu0 0.0
    %756 = vmatpush1.xpose.msra.mxu0 0.0
    %757 = vmatprep.subr.mxu0 0.0
    %758 = vmatpush1.xpose.msra.mxu0 0.0
    %759 = vmatprep.subr.mxu0 0.0
    %760 = vmatpush1.xpose.msra.mxu0 0.0
    %761 = vmatprep.subr.mxu0 0.0
    %762 = vmatpush1.xpose.msra.mxu0 0.0
    %763 = vmatprep.subr.mxu0 0.0
    %764 = vmatpush1.xpose.msra.mxu0 0.0
    %765 = vmatprep.subr.mxu0 0.0
    %766 = vmatpush1.xpose.msra.mxu0 0.0
    %767 = vmatprep.subr.mxu0 0.0
    %768 = vmatpush1.xpose.msra.mxu0 0.0
    %769 = vmatprep.subr.mxu0 0.0
    %770 = vmatpush1.xpose.msra.mxu0 0.0
    %771 = vmatprep.subr.mxu0 0.0
    %772 = vmatpush1.xpose.msra.mxu0 0.0
    %773 = vmatprep.subr.mxu0 0.0
    %774 = vmatpush1.xpose.msra.mxu0 0.0
    %775 = vmatprep.subr.mxu0 0.0
    %776 = vmatpush1.xpose.msra.mxu0 0.0
    %777 = vmatprep.subr.mxu0 0.0
    %778 = vmatpush1.xpose.msra.mxu0 0.0
    %779 = vmatprep.subr.mxu0 0.0
    %780 = vmatpush1.xpose.msra.mxu0 0.0
    %781 = vmatprep.subr.mxu0 0.0
    %782 = vmatpush1.xpose.msra.mxu0 0.0
    %783 = vmatprep.subr.mxu0 0.0
    %784 = vmatpush1.xpose.msra.mxu0 0.0
    %785 = vmatprep.subr.mxu0 0.0
    %786 = vmatpush1.xpose.msra.mxu0 0.0
    %787 = vmatprep.subr.mxu0 0.0
    %788 = vmatpush1.xpose.msra.mxu0 0.0
    %789 = vmatprep.subr.mxu0 0.0
    %790 = vmatpush1.xpose.msra.mxu0 0.0
    %791 = vmatprep.subr.mxu0 0.0
    %792 = vmatpush1.xpose.msra.mxu0 0.0
    %793 = vmatprep.subr.mxu0 0.0
    %794 = vmatpush1.xpose.msra.mxu0 0.0
    %795 = vmatprep.subr.mxu0 0.0
    %796 = vmatpush1.xpose.msra.mxu0 0.0
    %797 = vmatprep.subr.mxu0 0.0
    %798 = vmatpush1.xpose.msra.mxu0 0.0
    %799 = vmatprep.subr.mxu0 0.0
    %800 = vmatpush1.xpose.msra.mxu0 0.0
    %801 = vmatprep.mubr.f32.mxu0 0.0
    %802 = vmatmul.mubr.f32.gmra.mrb[0].mxu0 %v711
    %v803 = vpop.f32.mrb[0].mxu0
    %v804 = vadd.f32 0.0, %v803
    %v805 = vpop.f32.mrb[0].mxu0
    %806 = vdwg.mxu0
    %v807 = vmul.f32 %v804, 2.0
    %v808 = vlaneseq
    %v809 = vshrl.u32 %v808, 7
    %v810 = vsub.s32 3, %v809
    %v811 = vrot.slane %v18, %v810
    %v812 = vsub.f32 %v811, %v807
    %v813 = vsel %vm134, %v812, inf
    %814 = vmin.xlane.f32.xlu0 %v813
    %v815 = vpop.xlane.xlu0 %814
    %vm816 = vcmp.le.f32.partialorder %v812, %v815
    %v817 = vsel %vm816, %v20, 64
    %v818 = vsel %vm134, %v817, 2147483647
    %v819 = vand.u32 %v818, 65535
    %v820 = vshra.s32 %v818, 16
    %v821 = vcvt.s32.f32 %v819
    %v822 = vcvt.s32.f32 %v820
    %823 = vmin.xlane.f32.xlu0 %v822
    %v824 = vpop.xlane.xlu0 %823
    %vm825 = vcmp.eq.f32.partialorder %v822, %v824
    %v826 = vsel %vm825, %v821, inf
    %827 = vmin.xlane.f32.xlu0 %v826
    %v828 = vpop.xlane.xlu0 %827
    %v829 = vcvt.f32.s32 %v828
    %v830 = vcvt.f32.s32 %v824
    %v831 = vshll.u32 %v830, 16
    %v832 = vadd.s32 %v831, %v829
    %vm833 = vcmp.eq.s32.totalorder %v20, %v832
    %v834 = vsel %vm833, 1, 0
    %v835 = vcvt.s32.f32 %v834
    %v837 = vsel %vm134, %v835, 0
    %839 = vmatprep.subr.mxu0 0.0
    %840 = vmatpush1.msra.mxu0 %v700
    %841 = vmatprep.subr.mxu0 0.0
    %842 = vmatpush1.msra.mxu0 %v701
    %843 = vmatprep.subr.mxu0 0.0
    %844 = vmatpush1.msra.mxu0 %v702
    %845 = vmatprep.subr.mxu0 0.0
    %846 = vmatpush1.msra.mxu0 %v703
    %847 = vmatprep.subr.mxu0 0.0
    %848 = vmatpush1.msra.mxu0 %v704
    %849 = vmatprep.subr.mxu0 0.0
    %850 = vmatpush1.msra.mxu0 %v705
    %851 = vmatprep.subr.mxu0 0.0
    %852 = vmatpush1.msra.mxu0 %v706
    %853 = vmatprep.subr.mxu0 0.0
    %854 = vmatpush1.msra.mxu0 %v707
    %855 = vmatprep.subr.mxu0 0.0
    %856 = vmatpush1.msra.mxu0 0.0
    %857 = vmatprep.subr.mxu0 0.0
    %858 = vmatpush1.msra.mxu0 0.0
    %859 = vmatprep.subr.mxu0 0.0
    %860 = vmatpush1.msra.mxu0 0.0
    %861 = vmatprep.subr.mxu0 0.0
    %862 = vmatpush1.msra.mxu0 0.0
    %863 = vmatprep.subr.mxu0 0.0
    %864 = vmatpush1.msra.mxu0 0.0
    %865 = vmatprep.subr.mxu0 0.0
    %866 = vmatpush1.msra.mxu0 0.0
    %867 = vmatprep.subr.mxu0 0.0
    %868 = vmatpush1.msra.mxu0 0.0
    %869 = vmatprep.subr.mxu0 0.0
    %870 = vmatpush1.msra.mxu0 0.0
    %871 = vmatprep.subr.mxu0 0.0
    %872 = vmatpush1.msra.mxu0 0.0
    %873 = vmatprep.subr.mxu0 0.0
    %874 = vmatpush1.msra.mxu0 0.0
    %875 = vmatprep.subr.mxu0 0.0
    %876 = vmatpush1.msra.mxu0 0.0
    %877 = vmatprep.subr.mxu0 0.0
    %878 = vmatpush1.msra.mxu0 0.0
    %879 = vmatprep.subr.mxu0 0.0
    %880 = vmatpush1.msra.mxu0 0.0
    %881 = vmatprep.subr.mxu0 0.0
    %882 = vmatpush1.msra.mxu0 0.0
    %883 = vmatprep.subr.mxu0 0.0
    %884 = vmatpush1.msra.mxu0 0.0
    %885 = vmatprep.subr.mxu0 0.0
    %886 = vmatpush1.msra.mxu0 0.0
    %887 = vmatprep.subr.mxu0 0.0
    %888 = vmatpush1.msra.mxu0 0.0
    %889 = vmatprep.subr.mxu0 0.0
    %890 = vmatpush1.msra.mxu0 0.0
    %891 = vmatprep.subr.mxu0 0.0
    %892 = vmatpush1.msra.mxu0 0.0
    %893 = vmatprep.subr.mxu0 0.0
    %894 = vmatpush1.msra.mxu0 0.0
    %895 = vmatprep.subr.mxu0 0.0
    %896 = vmatpush1.msra.mxu0 0.0
    %897 = vmatprep.subr.mxu0 0.0
    %898 = vmatpush1.msra.mxu0 0.0
    %899 = vmatprep.subr.mxu0 0.0
    %900 = vmatpush1.msra.mxu0 0.0
    %901 = vmatprep.subr.mxu0 0.0
    %902 = vmatpush1.msra.mxu0 0.0
    %903 = vmatprep.mubr.f32.mxu0 0.0
    %904 = vmatmul.mubr.f32.gmra.mrb[0].mxu0 %v837
    %v905 = vpop.f32.mrb[0].mxu0
    %v906 = vadd.f32 0.0, %v905
    %v907 = vpop.f32.mrb[0].mxu0
    %908 = vdwg.mxu0
    %910 = vrot.lane.b32.xlu0 %v906, 48
    %v911 = vpop.permute.xlu0 %910
    %vm913 = vcmask 523648
    %914 = vst.msk [vmem:[#allocation2] sm:$0xff] %vm913, %v911
    %v915 = vmul.f32 %v698, %v698
    %917 = vrot.lane.b32.xlu0 %v915, 80
    %v918 = vpop.permute.xlu0 %917
    %v920 = vsel %vm30, %v918, 0.0
    %921 = vadd.xlane.f32.xlu0 %v920
    %v922 = vpop.xlane.xlu0 %921
    %vm923 = vcmp.eq.s32.totalorder %v20, 3
    %v924 = vsel %vm923, %v832, %v695
    %v925 = vadd.f32 %v815, %v922
    %v926 = vsel %vm923, %v925, %v697
    %vm927 = vcmask 31744
    %928 = vst.msk [vmem:[%s4] sm:$0xff] %vm927, %v924
    %929 = vst.msk [vmem:[%s5] sm:$0xff] %vm927, %v926
    // Predicated region
    $region14: #{tpu_custom_call.1} parent=1 // pred_check
      _
    $region15: #{tpu_custom_call.1} parent=1 // pred_check_branch
      %931 = sbr.rel (0) target = $region17
    $region16: #{tpu_custom_call.1} parent=1 // pred_region
      %s933 = ssub.s32 128, 128
      %934 = vsyncadd [#allocation3], %s933
      %s936 = sshll.u32 [#allocation2], 4
      %s937 = int_to_ptr.vmem [resolvable:$true] %s936
      %939 = dma.vmem_to_hbm [thread:$0]  %s937, 128, %s3, [#allocation3]
    $region17: #{tpu_custom_call.1} parent=1 // pred_fallthru
      _
    // Predicated region
    $region18: #{tpu_custom_call.1} parent=1 // pred_check
      _
    $region19: #{tpu_custom_call.1} parent=1 // pred_check_branch
      %941 = sbr.rel (0) target = $region21
    $region20: #{tpu_custom_call.1} parent=1 // pred_region
      _
    $region21: #{tpu_custom_call.1} parent=1 // pred_fallthru
      _
    // Predicated region
    $region22: #{tpu_custom_call.1} parent=1 // pred_check
      _
    $region23: #{tpu_custom_call.1} parent=1 // pred_check_branch
      %943 = sbr.rel (0) target = $region25
    $region24: #{tpu_custom_call.1} parent=1 // pred_region
      _
    $region25: #{tpu_custom_call.1} parent=1 // pred_fallthru
      _
    // Predicated region
    $region26: #{tpu_custom_call.1} parent=1 // pred_check
      _
    $region27: #{tpu_custom_call.1} parent=1 // pred_check_branch
      %945 = sbr.rel (0) target = $region29
    $region28: #{tpu_custom_call.1} parent=1 // pred_region
      %946 = dma.done [#allocation3], 128
    $region29: #{tpu_custom_call.1} parent=1 // pred_fallthru
      _
    // Predicated region
    $region30: #{tpu_custom_call.1} parent=1 // pred_check
      _
    $region31: #{tpu_custom_call.1} parent=1 // pred_check_branch
      %948 = sbr.rel (0) target = $region33
    $region32: #{tpu_custom_call.1} parent=1 // pred_region
      _
    $region33: #{tpu_custom_call.1} parent=1 // pred_fallthru
      _
    // Predicated region
    $region34: #{tpu_custom_call.1} parent=1 // pred_check
      _
    $region35: #{tpu_custom_call.1} parent=1 // pred_check_branch
      %950 = sbr.rel (0) target = $region37
    $region36: #{tpu_custom_call.1} parent=1 // pred_region
      _
    $region37: #{tpu_custom_call.1} parent=1 // pred_fallthru
      _
    %951 = vsyncpa [#allocation3], 1

</llo_original>
